<compile_context>
chip_gen: v6e
topology: v6e:2x2x1
jax: 0.10.0
libtpu: 0.0.40
codegen_flags: <defaults>
</compile_context>

<pallas_src>
import functools

import jax
import jax.numpy as jnp
from jax.experimental import pallas as pl
from jax.experimental.pallas import tpu as pltpu


def _round_up(x, m):
    return ((x + m - 1) // m) * m


def _ceil_div(a, b):
    return -(-a // b)


def _cluster_memory_kernel(x_ref, f_ref, t_ref, *refs,
                           inv_temp, tile_n, n_valid, emit_logits):
    """One (batch-tile, bank-tile) grid step: bf16 MXU matmul + online softmax-CE."""
    if emit_logits:
        logits_ref, rowloss_ref, xn_sc, m_sc, l_sc, tgt_sc = refs
    else:
        rowloss_ref, xn_sc, m_sc, l_sc, tgt_sc = refs
        logits_ref = None

    j = pl.program_id(1)
    nn = pl.num_programs(1)

    # ---- per-batch-tile init: normalize once, fold 1/temp, reset accumulators ----
    @pl.when(j == 0)
    def _():
        x = x_ref[...].astype(jnp.float32)                        # (TB, D)
        sq = jnp.sum(x * x, axis=1, keepdims=True)                # (TB, 1)
        # F.normalize eps=1e-12:  x / max(||x||, eps) == x * rsqrt(max(sq, eps^2))
        scale = jax.lax.rsqrt(jnp.maximum(sq, jnp.float32(1e-24)))
        scale = scale * jnp.float32(inv_temp)                     # fold 1/temp into xn
        xn_sc[...] = (x * scale).astype(xn_sc.dtype)              # bf16 for the MXU
        m_sc[...] = jnp.full(m_sc.shape, -jnp.inf, dtype=jnp.float32)
        l_sc[...] = jnp.zeros(l_sc.shape, dtype=jnp.float32)
        tgt_sc[...] = jnp.zeros(tgt_sc.shape, dtype=jnp.float32)

    # ---- MXU: (TB, D) x (TN, D) contracted over D, f32 accumulation ----
    logits = jax.lax.dot_general(
        xn_sc[...], f_ref[...],
        dimension_numbers=(((1,), (1,)), ((), ())),
        preferred_element_type=jnp.float32)                       # (TB, TN), already /temp

    # column indices of this bank tile; mask padded bank columns
    col = jax.lax.broadcasted_iota(jnp.int32, logits.shape, 1) + j * tile_n
    valid = col < n_valid
    masked = jnp.where(valid, logits, -jnp.inf)

    if emit_logits:
        logits_ref[...] = logits.astype(logits_ref.dtype)

    # ---- online log-sum-exp over the N tiles ----
    m_prev = m_sc[...]                                            # (TB, 1)
    m_new = jnp.maximum(m_prev, jnp.max(masked, axis=1, keepdims=True))
    alpha = jnp.exp(m_prev - m_new)
    l_sc[...] = alpha * l_sc[...] + jnp.sum(jnp.exp(masked - m_new),
                                            axis=1, keepdims=True)
    m_sc[...] = m_new

    # ---- target logit for this tile (targets are always < n_valid) ----
    tgt_sc[...] += jnp.sum(jnp.where(col == t_ref[...], logits, 0.0),
                           axis=1, keepdims=True)

    # ---- finalize per-row CE loss on the last N tile ----
    @pl.when(j == nn - 1)
    def _():
        lse = m_sc[...] + jnp.log(l_sc[...])                      # (TB, 1)
        rowloss_ref[...] = lse - tgt_sc[...]


def cluster_memory_forward(inputs, targets, features, temp, *,
                           tile_b=256, tile_n=1024,
                           return_logits=False, logits_dtype=jnp.bfloat16,
                           vmem_budget_bytes=56 * 1024 * 1024):
    """inputs: (B, D) float, targets: (B,) int, features: (N, D) float/bf16.

    Returns `loss` (default) or `(loss, logits)` when return_logits=True.
    Returned logits include the 1/temp scaling, matching ClusterMemory's
    `return_out=True` path; they are emitted in `logits_dtype` (bf16 default).

    Keep the memory bank persistently in bf16 (and N a multiple of 128) so the
    wrapper adds no per-call cast/pad HBM pass.
    """
    B, D = inputs.shape
    N, D2 = features.shape
    assert D == D2
    assert B == targets.shape[0]

    # ---- batch tiling: tiles are multiples of 16 (bf16 sublane packing); keep
    #      at least 2 batch tiles when B allows so v7x's 2 TCs can both run ----
    b_pad16 = _round_up(B, 16)
    tb = max(16, min(int(tile_b), b_pad16))
    nb = max(_ceil_div(b_pad16, tb), 2 if b_pad16 >= 32 else 1)
    tb = _round_up(_ceil_div(b_pad16, nb), 16)

    # ---- bank tiling: multiples of 128 lanes ----
    n_pad128 = _round_up(N, 128)
    tn = max(128, min(int(tile_n), n_pad128))
    nn = _ceil_div(n_pad128, tn)
    tn = _round_up(_ceil_div(n_pad128, nn), 128)

    # ---- derive VMEM footprint from the tiles; shrink if it would overflow ----
    logits_isz = jnp.dtype(logits_dtype).itemsize

    def vmem_bytes(tb_, tn_):
        byt = 2 * tn_ * D * 2                 # bank tiles, bf16, double-buffered
        byt += 2 * tb_ * D * 4                # input tiles, f32, double-buffered
        byt += tb_ * D * 2 + 3 * tb_ * 4      # xn + m/l/tgt scratch
        byt += 2 * 2 * tb_ * 128 * 4          # (TB,1) targets + rowloss (lane-padded), dbl-buf
        if return_logits:
            byt += 2 * tb_ * tn_ * logits_isz  # logits out tile, double-buffered
        return byt

    while vmem_bytes(tb, tn) > vmem_budget_bytes and tn > 128:
        nn += 1
        tn = _round_up(_ceil_div(n_pad128, nn), 128)
    while vmem_bytes(tb, tn) > vmem_budget_bytes and tb > 16:
        nb += 1
        tb = _round_up(_ceil_div(b_pad16, nb), 16)

    B_pad = nb * tb
    N_pad = nn * tn
    vmem_limit = int(min(100 * 1024 * 1024,
                         max(32 * 1024 * 1024, vmem_bytes(tb, tn) * 1.25)))

    # ---- bank: no per-call cast if the caller already stores it in bf16 ----
    features_bf16 = (features if features.dtype == jnp.bfloat16
                     else features.astype(jnp.bfloat16))
    if N_pad != N:
        features_bf16 = jnp.pad(features_bf16, ((0, N_pad - N), (0, 0)))

    x = inputs
    t = targets.astype(jnp.int32)
    if B_pad != B:
        x = jnp.pad(x, ((0, B_pad - B), (0, 0)))
        t = jnp.pad(t, ((0, B_pad - B),))
    t2d = t.reshape(B_pad, 1)

    kernel = functools.partial(_cluster_memory_kernel,
                               inv_temp=float(1.0 / temp), tile_n=tn,
                               n_valid=N, emit_logits=return_logits)

    out_shape = [jax.ShapeDtypeStruct((B_pad, 1), jnp.float32)]
    out_specs = [pl.BlockSpec((tb, 1), lambda i, j: (i, 0))]
    if return_logits:
        out_shape = [jax.ShapeDtypeStruct((B_pad, N_pad), logits_dtype)] + out_shape
        out_specs = [pl.BlockSpec((tb, tn), lambda i, j: (i, j))] + out_specs

    outs = pl.pallas_call(
        kernel,
        out_shape=tuple(out_shape),
        grid_spec=pltpu.PrefetchScalarGridSpec(
            num_scalar_prefetch=0,
            grid=(nb, nn),
            in_specs=[
                pl.BlockSpec((tb, D), lambda i, j: (i, 0)),   # inputs (fetched once per batch tile)
                pl.BlockSpec((tn, D), lambda i, j: (j, 0)),   # feature bank (bf16)
                pl.BlockSpec((tb, 1), lambda i, j: (i, 0)),   # targets
            ],
            out_specs=tuple(out_specs),
            scratch_shapes=[
                pltpu.VMEM((tb, D), jnp.bfloat16),   # xn (normalized, /temp folded)
                pltpu.VMEM((tb, 1), jnp.float32),    # running max
                pltpu.VMEM((tb, 1), jnp.float32),    # running sum-exp
                pltpu.VMEM((tb, 1), jnp.float32),    # running target logit
            ],
        ),
        compiler_params=pltpu.CompilerParams(
            dimension_semantics=("parallel", "arbitrary"),
            vmem_limit_bytes=vmem_limit,
        ),
    )(x, features_bf16, t2d)

    if return_logits:
        logits_pad, rowloss = outs
        loss = jnp.mean(rowloss[:B, 0])
        return loss, logits_pad[:B, :N]
    rowloss = outs[-1]
    loss = jnp.mean(rowloss[:B, 0])
    return loss


def _reference(inputs, targets, features_bf16, temp):
    """Pure-JAX reference of the same numeric path (bf16 matmul, f32 accum)."""
    inv_temp = jnp.float32(1.0 / temp)
    x = inputs.astype(jnp.float32)
    sq = jnp.sum(x * x, axis=1, keepdims=True)
    xn = x * (jax.lax.rsqrt(jnp.maximum(sq, jnp.float32(1e-24))) * inv_temp)
    logits = jax.lax.dot_general(
        xn.astype(jnp.bfloat16), features_bf16.astype(jnp.bfloat16),
        dimension_numbers=(((1,), (1,)), ((), ())),
        preferred_element_type=jnp.float32)
    logz = jax.scipy.special.logsumexp(logits, axis=1)
    tgt = logits[jnp.arange(logits.shape[0]), targets]
    return jnp.mean(logz - tgt), logits


if __name__ == "__main__":
    # Small synthetic shapes consistent with ClusterMemory(num_features, num_samples).
    B = 20               # batch (deliberately not a multiple of 16: exercises row padding/masking)
    num_features = 256   # D
    num_samples = 500    # N (not a multiple of 128: exercises bank-column masking)
    temp = 0.05
    momentum = 0.2       # unused in forward (backward-only momentum bank update)

    key = jax.random.PRNGKey(0)
    k_in, k_feat, k_tgt = jax.random.split(key, 3)

    inputs = jax.random.normal(k_in, (B, num_features), dtype=jnp.float32)
    targets = jax.random.randint(k_tgt, (B,), 0, num_samples, dtype=jnp.int32)

    # The PyTorch module registers a zero buffer; fill it with L2-normalized rows
    # (as the training loop would before the first forward) for a meaningful test.
    feats = jax.random.normal(k_feat, (num_samples, num_features), dtype=jnp.float32)
    feats = feats / jnp.linalg.norm(feats, axis=1, keepdims=True)
    # Keep the memory bank persistently in bf16 -> no per-call cast in the wrapper.
    features = feats.astype(jnp.bfloat16)

    # Small tile_n so the grid has several bank tiles (exercises the online LSE);
    # batch padding produces two 16-row batch tiles (exercises the parallel axis).
    loss = cluster_memory_forward(inputs, targets, features, temp, tile_n=256)
    loss = jax.block_until_ready(loss)

    loss2, logits = cluster_memory_forward(inputs, targets, features, temp,
                                           tile_n=256, return_logits=True)
    logits = jax.block_until_ready(logits)

    ref_loss, ref_logits = _reference(inputs, targets, features, temp)

    assert jnp.allclose(loss, ref_loss, atol=2e-3, rtol=2e-3), (loss, ref_loss)
    assert jnp.allclose(loss2, ref_loss, atol=2e-3, rtol=2e-3), (loss2, ref_loss)
    # logits are emitted in bf16 (deliberate HBM-write halving) -> looser tolerance
    assert jnp.allclose(logits.astype(jnp.float32), ref_logits,
                        atol=0.15, rtol=0.02), "logits mismatch"

    print("KERNEL_OK")
</pallas_src>

<mosaic_0001>
module attributes {stable_mosaic.version = 11 : i64} {
  func.func @_cluster_memory_kernel(%arg0: i32, %arg1: i32, %arg2: memref<16x256xf32, #tpu.memory_space<vmem>>, %arg3: memref<256x256xbf16, #tpu.memory_space<vmem>>, %arg4: memref<16x1xi32, #tpu.memory_space<vmem>>, %arg5: memref<16x1xf32, #tpu.memory_space<vmem>>, %arg6: memref<16x256xbf16, #tpu.memory_space<vmem>>, %arg7: memref<16x1xf32, #tpu.memory_space<vmem>>, %arg8: memref<16x1xf32, #tpu.memory_space<vmem>>, %arg9: memref<16x1xf32, #tpu.memory_space<vmem>>) attributes {dimension_semantics = [#tpu.dimension_semantics<parallel>, #tpu.dimension_semantics<arbitrary>], iteration_bounds = array<i64: 2, 2>, scalar_prefetch = 0 : i64, scratch_operands = 4 : i64, tpu.core_type = #tpu.core_type<tc>, window_params = [{transform_indices = @transform_0, window_bounds = array<i64: 16, 256>}, {transform_indices = @transform_1, window_bounds = array<i64: 256, 256>}, {transform_indices = @transform_2, window_bounds = array<i64: 16, 1>}, {transform_indices = @transform_3, window_bounds = array<i64: 16, 1>}]} {
    %c0_i32 = arith.constant 0 : i32
    %0 = arith.cmpi eq, %arg1, %c0_i32 : i32
    %1 = arith.extui %0 : i1 to i32
    %c0_i32_0 = arith.constant 0 : i32
    %2 = arith.cmpi ne, %1, %c0_i32_0 : i32
    scf.if %2 {
      %c0_24 = arith.constant 0 : index
      %c0_25 = arith.constant 0 : index
      %43 = vector.load %arg2[%c0_24, %c0_25] : memref<16x256xf32, #tpu.memory_space<vmem>>, vector<16x256xf32>
      %44 = arith.mulf %43, %43 : vector<16x256xf32>
      %cst_26 = arith.constant dense<0.000000e+00> : vector<16xf32>
      %45 = vector.multi_reduction <add>, %44, %cst_26 [1] : vector<16x256xf32> to vector<16xf32>
      %46 = vector.shape_cast %45 : vector<16xf32> to vector<16x1xf32>
      %cst_27 = arith.constant 1.000000e-24 : f32
      %47 = vector.broadcast %cst_27 : f32 to vector<16x1xf32>
      %48 = arith.maximumf %46, %47 : vector<16x1xf32>
      %49 = math.rsqrt %48 : vector<16x1xf32>
      %cst_28 = arith.constant 2.000000e+01 : f32
      %50 = vector.broadcast %cst_28 : f32 to vector<16x1xf32>
      %51 = arith.mulf %49, %50 : vector<16x1xf32>
      %52 = vector.broadcast %51 : vector<16x1xf32> to vector<16x256xf32>
      %53 = arith.mulf %43, %52 : vector<16x256xf32>
      %54 = arith.truncf %53 : vector<16x256xf32> to vector<16x256xbf16>
      %c0_29 = arith.constant 0 : index
      %c0_30 = arith.constant 0 : index
      %55 = vector.load %arg6[%c0_29, %c0_30] : memref<16x256xbf16, #tpu.memory_space<vmem>>, vector<16x256xbf16>
      tpu.vector_store %arg6[%c0_29, %c0_30], %54 {strides = array<i32>} : memref<16x256xbf16, #tpu.memory_space<vmem>>, vector<16x256xbf16>,
      %cst_31 = arith.constant 0xFF800000 : f32
      %56 = vector.broadcast %cst_31 : f32 to vector<16x1xf32>
      %c0_32 = arith.constant 0 : index
      %c0_33 = arith.constant 0 : index
      %57 = vector.load %arg7[%c0_32, %c0_33] : memref<16x1xf32, #tpu.memory_space<vmem>>, vector<16x1xf32>
      tpu.vector_store %arg7[%c0_32, %c0_33], %56 {strides = array<i32>} : memref<16x1xf32, #tpu.memory_space<vmem>>, vector<16x1xf32>,
      %cst_34 = arith.constant 0.000000e+00 : f32
      %58 = vector.broadcast %cst_34 : f32 to vector<16x1xf32>
      %c0_35 = arith.constant 0 : index
      %c0_36 = arith.constant 0 : index
      %59 = vector.load %arg8[%c0_35, %c0_36] : memref<16x1xf32, #tpu.memory_space<vmem>>, vector<16x1xf32>
      tpu.vector_store %arg8[%c0_35, %c0_36], %58 {strides = array<i32>} : memref<16x1xf32, #tpu.memory_space<vmem>>, vector<16x1xf32>,
      %cst_37 = arith.constant 0.000000e+00 : f32
      %60 = vector.broadcast %cst_37 : f32 to vector<16x1xf32>
      %c0_38 = arith.constant 0 : index
      %c0_39 = arith.constant 0 : index
      %61 = vector.load %arg9[%c0_38, %c0_39] : memref<16x1xf32, #tpu.memory_space<vmem>>, vector<16x1xf32>
      tpu.vector_store %arg9[%c0_38, %c0_39], %60 {strides = array<i32>} : memref<16x1xf32, #tpu.memory_space<vmem>>, vector<16x1xf32>,
    } else {
    }
    %c0 = arith.constant 0 : index
    %c0_1 = arith.constant 0 : index
    %3 = vector.load %arg6[%c0, %c0_1] : memref<16x256xbf16, #tpu.memory_space<vmem>>, vector<16x256xbf16>
    %c0_2 = arith.constant 0 : index
    %c0_3 = arith.constant 0 : index
    %4 = vector.load %arg3[%c0_2, %c0_3] : memref<256x256xbf16, #tpu.memory_space<vmem>>, vector<256x256xbf16>
    %cst = arith.constant dense<0.000000e+00> : vector<16x256xf32>
    %5 = tpu.matmul %3, %4, %cst {dimension_numbers = #tpu.dot_dimension_numbers<[1], [1], [0], [0], [0, 0, 1, 0], [], []>} : vector<16x256xbf16>, vector<256x256xbf16>, vector<16x256xf32> -> vector<16x256xf32>
    %6 = tpu.iota {dimensions = array<i32: 1>} : vector<16x256xi32>
    %c256_i32 = arith.constant 256 : i32
    %7 = arith.muli %arg1, %c256_i32 : i32
    %8 = vector.broadcast %7 : i32 to vector<16x256xi32>
    %9 = arith.addi %6, %8 : vector<16x256xi32>
    %c500_i32 = arith.constant 500 : i32
    %10 = vector.broadcast %c500_i32 : i32 to vector<16x256xi32>
    %11 = arith.cmpi slt, %9, %10 : vector<16x256xi32>
    %cst_4 = arith.constant 0xFF800000 : f32
    %12 = vector.broadcast %cst_4 : f32 to vector<16x256xf32>
    %13 = arith.select %11, %5, %12 : vector<16x256xi1>, vector<16x256xf32>
    %c0_5 = arith.constant 0 : index
    %c0_6 = arith.constant 0 : index
    %14 = vector.load %arg7[%c0_5, %c0_6] : memref<16x1xf32, #tpu.memory_space<vmem>>, vector<16x1xf32>
    %cst_7 = arith.constant dense<0xFF800000> : vector<16xf32>
    %15 = vector.multi_reduction <maximumf>, %13, %cst_7 [1] : vector<16x256xf32> to vector<16xf32>
    %16 = vector.shape_cast %15 : vector<16xf32> to vector<16x1xf32>
    %17 = arith.maximumf %14, %16 : vector<16x1xf32>
    %18 = arith.subf %14, %17 : vector<16x1xf32>
    %19 = math.exp %18 : vector<16x1xf32>
    %c0_8 = arith.constant 0 : index
    %c0_9 = arith.constant 0 : index
    %20 = vector.load %arg8[%c0_8, %c0_9] : memref<16x1xf32, #tpu.memory_space<vmem>>, vector<16x1xf32>
    %21 = arith.mulf %19, %20 : vector<16x1xf32>
    %22 = vector.broadcast %17 : vector<16x1xf32> to vector<16x256xf32>
    %23 = arith.subf %13, %22 : vector<16x256xf32>
    %24 = math.exp %23 : vector<16x256xf32>
    %cst_10 = arith.constant dense<0.000000e+00> : vector<16xf32>
    %25 = vector.multi_reduction <add>, %24, %cst_10 [1] : vector<16x256xf32> to vector<16xf32>
    %26 = vector.shape_cast %25 : vector<16xf32> to vector<16x1xf32>
    %27 = arith.addf %21, %26 : vector<16x1xf32>
    %c0_11 = arith.constant 0 : index
    %c0_12 = arith.constant 0 : index
    %28 = vector.load %arg8[%c0_11, %c0_12] : memref<16x1xf32, #tpu.memory_space<vmem>>, vector<16x1xf32>
    tpu.vector_store %arg8[%c0_11, %c0_12], %27 {strides = array<i32>} : memref<16x1xf32, #tpu.memory_space<vmem>>, vector<16x1xf32>,
    %c0_13 = arith.constant 0 : index
    %c0_14 = arith.constant 0 : index
    %29 = vector.load %arg7[%c0_13, %c0_14] : memref<16x1xf32, #tpu.memory_space<vmem>>, vector<16x1xf32>
    tpu.vector_store %arg7[%c0_13, %c0_14], %17 {strides = array<i32>} : memref<16x1xf32, #tpu.memory_space<vmem>>, vector<16x1xf32>,
    %c0_15 = arith.constant 0 : index
    %c0_16 = arith.constant 0 : index
    %30 = vector.load %arg9[%c0_15, %c0_16] : memref<16x1xf32, #tpu.memory_space<vmem>>, vector<16x1xf32>
    %c0_17 = arith.constant 0 : index
    %c0_18 = arith.constant 0 : index
    %31 = vector.load %arg4[%c0_17, %c0_18] : memref<16x1xi32, #tpu.memory_space<vmem>>, vector<16x1xi32>
    %32 = vector.broadcast %31 : vector<16x1xi32> to vector<16x256xi32>
    %33 = arith.cmpi eq, %9, %32 : vector<16x256xi32>
    %cst_19 = arith.constant 0.000000e+00 : f32
    %34 = vector.broadcast %cst_19 : f32 to vector<16x256xf32>
    %35 = arith.select %33, %5, %34 : vector<16x256xi1>, vector<16x256xf32>
    %cst_20 = arith.constant dense<0.000000e+00> : vector<16xf32>
    %36 = vector.multi_reduction <add>, %35, %cst_20 [1] : vector<16x256xf32> to vector<16xf32>
    %37 = vector.shape_cast %36 : vector<16xf32> to vector<16x1xf32>
    %38 = arith.addf %30, %37 : vector<16x1xf32>
    %c0_21 = arith.constant 0 : index
    %c0_22 = arith.constant 0 : index
    %39 = vector.load %arg9[%c0_21, %c0_22] : memref<16x1xf32, #tpu.memory_space<vmem>>, vector<16x1xf32>
    tpu.vector_store %arg9[%c0_21, %c0_22], %38 {strides = array<i32>} : memref<16x1xf32, #tpu.memory_space<vmem>>, vector<16x1xf32>,
    %c1_i32 = arith.constant 1 : i32
    %40 = arith.cmpi eq, %arg1, %c1_i32 : i32
    %41 = arith.extui %40 : i1 to i32
    %c0_i32_23 = arith.constant 0 : i32
    %42 = arith.cmpi ne, %41, %c0_i32_23 : i32
    scf.if %42 {
      %c0_24 = arith.constant 0 : index
      %c0_25 = arith.constant 0 : index
      %43 = vector.load %arg7[%c0_24, %c0_25] : memref<16x1xf32, #tpu.memory_space<vmem>>, vector<16x1xf32>
      %c0_26 = arith.constant 0 : index
      %c0_27 = arith.constant 0 : index
      %44 = vector.load %arg8[%c0_26, %c0_27] : memref<16x1xf32, #tpu.memory_space<vmem>>, vector<16x1xf32>
      %45 = math.log %44 : vector<16x1xf32>
      %46 = arith.addf %43, %45 : vector<16x1xf32>
      %c0_28 = arith.constant 0 : index
      %c0_29 = arith.constant 0 : index
      %47 = vector.load %arg9[%c0_28, %c0_29] : memref<16x1xf32, #tpu.memory_space<vmem>>, vector<16x1xf32>
      %48 = arith.subf %46, %47 : vector<16x1xf32>
      %c0_30 = arith.constant 0 : index
      %c0_31 = arith.constant 0 : index
      %49 = vector.load %arg5[%c0_30, %c0_31] : memref<16x1xf32, #tpu.memory_space<vmem>>, vector<16x1xf32>
      tpu.vector_store %arg5[%c0_30, %c0_31], %48 {strides = array<i32>} : memref<16x1xf32, #tpu.memory_space<vmem>>, vector<16x1xf32>,
    } else {
    }
    return
  }
  func.func @transform_0(%arg0: i32, %arg1: i32) -> (i32, i32) {
    %c0_i32 = arith.constant 0 : i32
    %c0_i32_0 = arith.constant 0 : i32
    return %arg0, %c0_i32 : i32, i32
  }
  func.func @transform_1(%arg0: i32, %arg1: i32) -> (i32, i32) {
    %c0_i32 = arith.constant 0 : i32
    %c0_i32_0 = arith.constant 0 : i32
    return %arg1, %c0_i32 : i32, i32
  }
  func.func @transform_2(%arg0: i32, %arg1: i32) -> (i32, i32) {
    %c0_i32 = arith.constant 0 : i32
    %c0_i32_0 = arith.constant 0 : i32
    return %arg0, %c0_i32 : i32, i32
  }
  func.func @transform_3(%arg0: i32, %arg1: i32) -> (i32, i32) {
    %c0_i32 = arith.constant 0 : i32
    %c0_i32_0 = arith.constant 0 : i32
    return %arg0, %c0_i32 : i32, i32
  }
}

</mosaic_0001>

<llo_original>
// kernel: tpu_custom_call.1
$region0: #{tpu_custom_call.1}
  #allocation0 [shape = 'u32[]', space=smem, size = 0x4, offset = 0x4, fixed_abs, tag = 'smem constant byte address 0x4 - core index']
  #allocation1 [shape = 'u32[144,128]{1,0:T(1,128)}', space=vmem, size = 0x12000, scoped, tag = 'internal scratch']
  #allocation2 [shape = 'bf16[16,256]{1,0:T(8,128)(2,1)}', space=vmem, size = 0x2000, scoped, tag = 'scratch operand']
  #allocation3 [shape = 'f32[16,1]{1,0:T(8,128)}', space=vmem, size = 0x2000, scoped, tag = 'scratch operand']
  #allocation4 [shape = 'f32[16,1]{1,0:T(8,128)}', space=vmem, size = 0x2000, scoped, tag = 'scratch operand']
  #allocation5 [shape = 'f32[16,1]{1,0:T(8,128)}', space=vmem, size = 0x2000, scoped, tag = 'scratch operand']
  %s0 = inlined_call_operand.hbm [shape: f32[32,256], index: 0, kind: input, shape index: {}]
  %s1 = inlined_call_operand.hbm [shape: bf16[512,256], index: 1, kind: input, shape index: {}]
  %s2 = inlined_call_operand.vmem [shape: s32[32,1], index: 2, kind: input, shape index: {}]
  %s3 = inlined_call_operand.vmem [shape: f32[32,1], index: 3, kind: output, shape index: {}]
  %s4 = sld [smem:[#allocation0]]
  $region61: #{tpu_custom_call.1} parent=0
    _
  %s6 = ssub.s32 1, %s4
  %s7 = scalar_select 0, %s6, %s4
  $region1: #{tpu_custom_call.1} parent=0
    #allocation6 [shape = 'u8[32768]{0}', space=vmem, size = 0x8000, scoped, tag = 'input window, operand 0']
    #allocation7 [shape = 's32[2]{0}', space=sflag, size = 0x8, scoped, tag = 'scoped memory for tpu_custom_call.1']
    #allocation8 [shape = 'u8[262144]{0}', space=vmem, size = 0x40000, scoped, tag = 'input window, operand 1']
    #allocation9 [shape = 's32[2]{0}', space=sflag, size = 0x8, scoped, tag = 'scoped memory for tpu_custom_call.1']
    %8 = vsyncpa [#allocation7], 0
    %s9 = scalar_lea.sflag [#allocation7], 1
    %10 = vsyncpa %s9, 0
    %11 = vsyncpa [#allocation9], 0
    %s12 = scalar_lea.sflag [#allocation9], 1
    %13 = vsyncpa %s12, 0
    loop: start=0, step=1, limit=6
    $region2: #{tpu_custom_call.1} parent=1 // loop_pre_header
      _
    $region3: #{tpu_custom_call.1} parent=1 // loop_header
      %s15 = sphi 0, %s19
      %p16 = scmp.ge.s32.totalorder %s15, 6
      %s22 = sphi 0, %s34
      %s23 = sphi 0, %s30
      %s24 = sphi 0, %s22
      %s25 = sphi 0, %s23
      %s26 = sphi 0, %s24
      %s27 = sphi 0, %s25
      %s37 = sphi 0, %s39
      %s40 = sphi 0, %s37
      %s41 = sphi 0, %s40
      %s57 = sphi 0, %s41
      %s63 = sphi 0, %s65
      %s66 = sphi 0, %s63
      %s67 = sphi 0, %s66
      %s83 = sphi 0, %s67
      %s89 = sphi 0, %s91
      %s92 = sphi 0, %s89
      %s93 = sphi 0, %s92
      %s109 = sphi 0, %s93
      %s115 = sphi 0, %s117
      %s118 = sphi 0, %s115
      %s119 = sphi 0, %s118
      %s135 = sphi 0, %s119
    $region4: #{tpu_custom_call.1} parent=1 // loop_header_branch
      %18 = sbr.rel (%p16) target = $region8
    $region5: #{tpu_custom_call.1} parent=1 // loop_body
      %s20 = ssub.s32 %s15, 1
      %s21 = ssub.s32 %s15, 2
      %s28 = sadd.s32 1, %s23
      %p29 = scmp.ge.s32.totalorder %s28, 2
      %s30 = scalar_select %p29, 0, %s28
      %s31 = sadd.s32 1, %s22
      %s32 = scalar_select %p29, %s31, %s22
      %p33 = scmp.ge.s32.totalorder %s32, 2
      %s34 = scalar_select %p33, 0, %s32
      %s35 = ssub.s32 %s22, %s34
      %p36 = scmp.eq.s32.totalorder %s35, 0
      %s38 = sadd.s32 %s37, 1
      %s39 = scalar_select %p36, %s37, %s38
      %p42 = pneg %p36
      %p43 = scmp.eq.s32.totalorder %s15, 3
      %p44 = por %p42, %p43
      %p45 = scmp.ne.s32.totalorder %s37, %s40
      %p46 = scmp.eq.s32.totalorder %s15, 0
      %p47 = por %p45, %p46
      %p48 = scmp.ne.s32.totalorder %s37, %s40
      %p49 = scmp.eq.s32.totalorder %s20, 3
      %p50 = por %p48, %p49
      %p51 = scmp.ne.s32.totalorder %s40, %s41
      %p52 = scmp.eq.s32.totalorder %s20, 0
      %p53 = por %p51, %p52
      %p54 = scmp.ne.s32.totalorder %s40, %s41
      %p55 = scmp.eq.s32.totalorder %s21, 3
      %p56 = por %p54, %p55
      %p58 = scmp.ne.s32.totalorder %s41, %s57
      %p59 = scmp.eq.s32.totalorder %s21, 0
      %p60 = por %p58, %p59
      %s61 = ssub.s32 %s23, %s30
      %p62 = scmp.eq.s32.totalorder %s61, 0
      %s64 = sadd.s32 %s63, 1
      %s65 = scalar_select %p62, %s63, %s64
      %p68 = pneg %p62
      %p69 = scmp.eq.s32.totalorder %s15, 3
      %p70 = por %p68, %p69
      %p71 = scmp.ne.s32.totalorder %s63, %s66
      %p72 = scmp.eq.s32.totalorder %s15, 0
      %p73 = por %p71, %p72
      %p74 = scmp.ne.s32.totalorder %s63, %s66
      %p75 = scmp.eq.s32.totalorder %s20, 3
      %p76 = por %p74, %p75
      %p77 = scmp.ne.s32.totalorder %s66, %s67
      %p78 = scmp.eq.s32.totalorder %s20, 0
      %p79 = por %p77, %p78
      %p80 = scmp.ne.s32.totalorder %s66, %s67
      %p81 = scmp.eq.s32.totalorder %s21, 3
      %p82 = por %p80, %p81
      %p84 = scmp.ne.s32.totalorder %s67, %s83
      %p85 = scmp.eq.s32.totalorder %s21, 0
      %p86 = por %p84, %p85
      %s87 = ssub.s32 %s22, %s34
      %p88 = scmp.eq.s32.totalorder %s87, 0
      %s90 = sadd.s32 %s89, 1
      %s91 = scalar_select %p88, %s89, %s90
      %p94 = pneg %p88
      %p95 = scmp.eq.s32.totalorder %s15, 3
      %p96 = por %p94, %p95
      %p97 = scmp.ne.s32.totalorder %s89, %s92
      %p98 = scmp.eq.s32.totalorder %s15, 0
      %p99 = por %p97, %p98
      %p100 = scmp.ne.s32.totalorder %s89, %s92
      %p101 = scmp.eq.s32.totalorder %s20, 3
      %p102 = por %p100, %p101
      %p103 = scmp.ne.s32.totalorder %s92, %s93
      %p104 = scmp.eq.s32.totalorder %s20, 0
      %p105 = por %p103, %p104
      %p106 = scmp.ne.s32.totalorder %s92, %s93
      %p107 = scmp.eq.s32.totalorder %s21, 3
      %p108 = por %p106, %p107
      %p110 = scmp.ne.s32.totalorder %s93, %s109
      %p111 = scmp.eq.s32.totalorder %s21, 0
      %p112 = por %p110, %p111
      %s113 = ssub.s32 %s22, %s34
      %p114 = scmp.eq.s32.totalorder %s113, 0
      %s116 = sadd.s32 %s115, 1
      %s117 = scalar_select %p114, %s115, %s116
      %p120 = pneg %p114
      %p121 = scmp.eq.s32.totalorder %s15, 3
      %p122 = por %p120, %p121
      %p123 = scmp.ne.s32.totalorder %s115, %s118
      %p124 = scmp.eq.s32.totalorder %s15, 0
      %p125 = por %p123, %p124
      %p126 = scmp.ne.s32.totalorder %s115, %s118
      %p127 = scmp.eq.s32.totalorder %s20, 3
      %p128 = por %p126, %p127
      %p129 = scmp.ne.s32.totalorder %s118, %s119
      %p130 = scmp.eq.s32.totalorder %s20, 0
      %p131 = por %p129, %p130
      %p132 = scmp.ne.s32.totalorder %s118, %s119
      %p133 = scmp.eq.s32.totalorder %s21, 3
      %p134 = por %p132, %p133
      %p136 = scmp.ne.s32.totalorder %s119, %s135
      %p137 = scmp.eq.s32.totalorder %s21, 0
      %p138 = por %p136, %p137
      %p139 = scmp.le.s32.totalorder 1, %s15
      %p140 = scmp.lt.s32.totalorder %s15, 5
      %p141 = pnand %p139, %p140
      %p142 = pneg %p141
      // Predicated region
      $region9: #{tpu_custom_call.1} parent=5 // pred_check
        _
      $region10: #{tpu_custom_call.1} parent=5 // pred_check_branch
        %144 = sbr.rel (%p141) target = $region12
      $region11: #{tpu_custom_call.1} parent=5 // pred_region
        %s145 = ssub.s32 %s15, 1
      $region12: #{tpu_custom_call.1} parent=5 // pred_fallthru
        _
      %p146 = scmp.lt.s32.totalorder %s15, 4
      // Predicated region
      $region13: #{tpu_custom_call.1} parent=5 // pred_check
        %p147 = pneg %p146
      $region14: #{tpu_custom_call.1} parent=5 // pred_check_branch
        %149 = sbr.rel (%p147) target = $region16
      $region15: #{tpu_custom_call.1} parent=5 // pred_region
        // Predicated region
        $region17: #{tpu_custom_call.1} parent=15 // pred_check
          %p150 = pneg %p47
        $region18: #{tpu_custom_call.1} parent=15 // pred_check_branch
          %152 = sbr.rel (%p150) target = $region20
        $region19: #{tpu_custom_call.1} parent=15 // pred_region
          %s153 = sand.u32 %s37, 1
          %s154 = scalar_lea.sflag [#allocation7], %s153
          %s155 = sand.u32 %s37, 1
          %s156 = smul.addr %s155, 32
          %s157 = scalar_lea.vmem [#allocation6], %s156
          %s158 = smul.u32 2, %s22
          %s160 = ssub.s32 512, 512
          %161 = vsyncadd %s154, %s160
          %s162 = smul.addr %s158, 2
          %s163 = smul.addr %s162, 128
          %s164 = scalar_lea.hbm %s0, %s163
          %s165 = sshll.u32 %s157, 4
          %s166 = int_to_ptr.vmem [resolvable:$true] %s165
          %171 = dma.hbm_to_vmem [thread:$0]  %s164, 512, %s166, %s154, 256, 256, 16
        $region20: #{tpu_custom_call.1} parent=15 // pred_fallthru
          _
        // Predicated region
        $region21: #{tpu_custom_call.1} parent=15 // pred_check
          %p172 = pneg %p73
        $region22: #{tpu_custom_call.1} parent=15 // pred_check_branch
          %174 = sbr.rel (%p172) target = $region24
        $region23: #{tpu_custom_call.1} parent=15 // pred_region
          %s175 = sand.u32 %s63, 1
          %s176 = scalar_lea.sflag [#allocation9], %s175
          %s177 = sand.u32 %s63, 1
          %s178 = smul.addr %s177, 256
          %s179 = scalar_lea.vmem [#allocation8], %s178
          %s180 = smul.u32 32, %s23
          %s182 = ssub.s32 4096, 4096
          %183 = vsyncadd %s176, %s182
          %s184 = smul.addr %s180, 2
          %s185 = smul.addr %s184, 64
          %s186 = scalar_lea.hbm %s1, %s185
          %s187 = sshll.u32 %s179, 4
          %s188 = int_to_ptr.vmem [resolvable:$true] %s187
          %193 = dma.hbm_to_vmem [thread:$0]  %s186, 4096, %s188, %s176, 128, 128, 8
        $region24: #{tpu_custom_call.1} parent=15 // pred_fallthru
          _
        // Predicated region
        $region25: #{tpu_custom_call.1} parent=15 // pred_check
          %p194 = pneg %p99
        $region26: #{tpu_custom_call.1} parent=15 // pred_check_branch
          %196 = sbr.rel (%p194) target = $region28
        $region27: #{tpu_custom_call.1} parent=15 // pred_region
          %s197 = smul.u32 2, %s22
          %p198 = scmp.lt.s32.totalorder %s197, 3
          %s199 = scalar_select %p198, %s197, 3
          %s200 = smul.addr %s199, 8
          %s201 = scalar_lea.vmem %s2, %s200
          %s202 = smul.u32 2, %s22
        $region28: #{tpu_custom_call.1} parent=15 // pred_fallthru
          _
      $region16: #{tpu_custom_call.1} parent=5 // pred_fallthru
        _
      %p203 = scmp.le.s32.totalorder 1, %s15
      %p204 = scmp.lt.s32.totalorder %s15, 5
      %p205 = pnand %p203, %p204
      %p206 = pneg %p205
      // Predicated region
      $region29: #{tpu_custom_call.1} parent=5 // pred_check
        _
      $region30: #{tpu_custom_call.1} parent=5 // pred_check_branch
        %208 = sbr.rel (%p205) target = $region32
      $region31: #{tpu_custom_call.1} parent=5 // pred_region
        %s209 = ssub.s32 %s15, 1
        %s210 = sand.u32 %s40, 1
        %s211 = scalar_lea.sflag [#allocation7], %s210
        %s212 = sand.u32 %s40, 1
        %s213 = smul.addr %s212, 32
        %s214 = scalar_lea.vmem [#allocation6], %s213
        // Predicated region
        $region33: #{tpu_custom_call.1} parent=31 // pred_check
          %p215 = pneg %p53
        $region34: #{tpu_custom_call.1} parent=31 // pred_check_branch
          %217 = sbr.rel (%p215) target = $region36
        $region35: #{tpu_custom_call.1} parent=31 // pred_region
          %218 = dma.done %s211, 512
        $region36: #{tpu_custom_call.1} parent=31 // pred_fallthru
          _
        %s219 = sand.u32 %s66, 1
        %s220 = scalar_lea.sflag [#allocation9], %s219
        %s221 = sand.u32 %s66, 1
        %s222 = smul.addr %s221, 256
        %s223 = scalar_lea.vmem [#allocation8], %s222
        // Predicated region
        $region37: #{tpu_custom_call.1} parent=31 // pred_check
          %p224 = pneg %p79
        $region38: #{tpu_custom_call.1} parent=31 // pred_check_branch
          %226 = sbr.rel (%p224) target = $region40
        $region39: #{tpu_custom_call.1} parent=31 // pred_region
          %227 = dma.done %s220, 4096
        $region40: #{tpu_custom_call.1} parent=31 // pred_fallthru
          _
        %s228 = sand.u32 %s40, 1
        %s229 = scalar_lea.sflag [#allocation7], %s228
        %s230 = sand.u32 %s40, 1
        %s231 = smul.addr %s230, 32
        %s232 = scalar_lea.vmem [#allocation6], %s231
        %p233 = pneg %p53
        %p234 = pneg %p50
        %s235 = sand.u32 %s66, 1
        %s236 = scalar_lea.sflag [#allocation9], %s235
        %s237 = sand.u32 %s66, 1
        %s238 = smul.addr %s237, 256
        %s239 = scalar_lea.vmem [#allocation8], %s238
        %p240 = pneg %p79
        %p241 = pneg %p76
        %s242 = smul.u32 2, %s24
        %p243 = scmp.lt.s32.totalorder %s242, 3
        %s244 = scalar_select %p243, %s242, 3
        %s245 = smul.addr %s244, 8
        %s246 = scalar_lea.vmem %s2, %s245
        %p247 = pneg %p105
        %p248 = pneg %p102
        %p249 = pneg %p131
        %p250 = pneg %p128
        %s251 = smul.u32 2, %s24
        %p252 = scmp.lt.s32.totalorder %s251, 3
        %s253 = scalar_select %p252, %s251, 3
        %s254 = smul.addr %s253, 8
        %s255 = scalar_lea.vmem %s3, %s254
        %s256 = smul.u32 2, %s24
        %s257 = smul.u32 32, %s25
        %s258 = smul.u32 2, %s24
        %p259 = scmp.lt.s32.totalorder %s258, 3
        %s260 = scalar_select %p259, %s258, 3
        %s261 = smul.addr %s260, 8
        %s262 = scalar_lea.vmem %s2, %s261
        %s263 = smul.u32 2, %s24
        %s264 = smul.u32 2, %s24
        %p265 = scmp.lt.s32.totalorder %s264, 3
        %s266 = scalar_select %p265, %s264, 3
        %s267 = smul.addr %s266, 8
        %s268 = scalar_lea.vmem %s3, %s267
        %s269 = smul.u32 2, %s24
        %p270 = scmp.eq.s32.totalorder %s25, 0
        // Predicated region
        $region41: #{tpu_custom_call.1} parent=31 // pred_check
          %p271 = pneg %p270
        $region42: #{tpu_custom_call.1} parent=31 // pred_check_branch
          %273 = sbr.rel (%p271) target = $region44
        $region43: #{tpu_custom_call.1} parent=31 // pred_region
          %v274 = vld [vmem:[%s214] sm:$0xff]
          %v275 = vld [vmem:[%s214 + $0x8] sm:$0xff]
          %v276 = vld [vmem:[%s214 + $0x10] sm:$0xff]
          %v277 = vld [vmem:[%s214 + $0x18] sm:$0xff]
          %v278 = vmul.f32 %v274, %v274
          %v279 = vmul.f32 %v275, %v275
          %v280 = vmul.f32 %v276, %v276
          %v281 = vmul.f32 %v277, %v277
          %v282 = vadd.f32 %v278, %v279
          %283 = vadd.xlane.f32.xlu0 %v282
          %v284 = vpop.xlane.xlu0 %283
          %v285 = vadd.f32 %v280, %v281
          %286 = vadd.xlane.f32.xlu0 %v285
          %v287 = vpop.xlane.xlu0 %286
          %v288 = vmax.f32 %v284, 1e-24
          %v289 = vmax.f32 %v287, 1e-24
          %v290 = vrsqrt.pop %v288
          %v291 = vrsqrt.pop %v289
          %v292 = vmul.f32 %v290, 20.0
          %v293 = vmul.f32 %v291, 20.0
          %v294 = vmul.f32 %v274, %v292
          %v295 = vmul.f32 %v275, %v292
          %v296 = vmul.f32 %v276, %v293
          %v297 = vmul.f32 %v277, %v293
          %v298 = vpack.c.bf16 %v296, %v294
          %v299 = vpack.c.bf16 %v297, %v295
          %v302 = vunpack.c.l.b16 %v298
          %v303 = vunpack.c.l.b16 %v299
          %v304 = vunpack.c.h.b16 %v298
          %v305 = vunpack.c.h.b16 %v299
          %v306 = vpack.c.b16 %v303, %v302
          %v307 = vpack.c.b16 %v305, %v304
          %310 = vst [vmem:[#allocation2] sm:$0xff] %v306
          %311 = vst [vmem:[#allocation2 + $0x8] sm:$0xff] %v307
          %vm312 = vcmask 7168
          %313 = vst.msk [vmem:[#allocation3] sm:$0xff] %vm312, -inf
          %314 = vst.msk [vmem:[#allocation3 + $0x8] sm:$0xff] %vm312, -inf
          %315 = vst.msk [vmem:[#allocation4] sm:$0xff] %vm312, 0.0
          %316 = vst.msk [vmem:[#allocation4 + $0x8] sm:$0xff] %vm312, 0.0
          %317 = vst.msk [vmem:[#allocation5] sm:$0xff] %vm312, 0.0
          %318 = vst.msk [vmem:[#allocation5 + $0x8] sm:$0xff] %vm312, 0.0
        $region44: #{tpu_custom_call.1} parent=31 // pred_fallthru
          _
        %v319 = vld [vmem:[#allocation2] sm:$0xff]
        %v320 = vld [vmem:[#allocation2 + $0x8] sm:$0xff]
        %v321 = vld [vmem:[%s223] sm:$0xff]
        %v322 = vld [vmem:[%s223 + $0x8] sm:$0xff]
        %v323 = vld [vmem:[%s223 + $0x10] sm:$0xff]
        %v324 = vld [vmem:[%s223 + $0x18] sm:$0xff]
        %v325 = vld [vmem:[%s223 + $0x20] sm:$0xff]
        %v326 = vld [vmem:[%s223 + $0x28] sm:$0xff]
        %v327 = vld [vmem:[%s223 + $0x30] sm:$0xff]
        %v328 = vld [vmem:[%s223 + $0x38] sm:$0xff]
        %v329 = vld [vmem:[%s223 + $0x40] sm:$0xff]
        %v330 = vld [vmem:[%s223 + $0x48] sm:$0xff]
        %v331 = vld [vmem:[%s223 + $0x50] sm:$0xff]
        %v332 = vld [vmem:[%s223 + $0x58] sm:$0xff]
        %v333 = vld [vmem:[%s223 + $0x60] sm:$0xff]
        %v334 = vld [vmem:[%s223 + $0x68] sm:$0xff]
        %v335 = vld [vmem:[%s223 + $0x70] sm:$0xff]
        %v336 = vld [vmem:[%s223 + $0x78] sm:$0xff]
        %v337 = vld [vmem:[%s223 + $0x80] sm:$0xff]
        %v338 = vld [vmem:[%s223 + $0x88] sm:$0xff]
        %v339 = vld [vmem:[%s223 + $0x90] sm:$0xff]
        %v340 = vld [vmem:[%s223 + $0x98] sm:$0xff]
        %v341 = vld [vmem:[%s223 + $0xa0] sm:$0xff]
        %v342 = vld [vmem:[%s223 + $0xa8] sm:$0xff]
        %v343 = vld [vmem:[%s223 + $0xb0] sm:$0xff]
        %v344 = vld [vmem:[%s223 + $0xb8] sm:$0xff]
        %v345 = vld [vmem:[%s223 + $0xc0] sm:$0xff]
        %v346 = vld [vmem:[%s223 + $0xc8] sm:$0xff]
        %v347 = vld [vmem:[%s223 + $0xd0] sm:$0xff]
        %v348 = vld [vmem:[%s223 + $0xd8] sm:$0xff]
        %v349 = vld [vmem:[%s223 + $0xe0] sm:$0xff]
        %v350 = vld [vmem:[%s223 + $0xe8] sm:$0xff]
        %v351 = vld [vmem:[%s223 + $0xf0] sm:$0xff]
        %v352 = vld [vmem:[%s223 + $0xf8] sm:$0xff]
        %v355 = vunpack.c.l.b16 %v319
        %v356 = vunpack.c.h.b16 %v319
        %v357 = vunpack.c.l.b16 %v320
        %v358 = vunpack.c.h.b16 %v320
        %v359 = vpack.c.b16 %v357, %v355
        %v360 = vpack.c.b16 %v358, %v356
        %v395 = vunpack.c.l.b16 %v321
        %v396 = vunpack.c.h.b16 %v321
        %v397 = vunpack.c.l.b16 %v322
        %v398 = vunpack.c.h.b16 %v322
        %v399 = vunpack.c.l.b16 %v323
        %v400 = vunpack.c.h.b16 %v323
        %v401 = vunpack.c.l.b16 %v324
        %v402 = vunpack.c.h.b16 %v324
        %v403 = vunpack.c.l.b16 %v325
        %v404 = vunpack.c.h.b16 %v325
        %v405 = vunpack.c.l.b16 %v326
        %v406 = vunpack.c.h.b16 %v326
        %v407 = vunpack.c.l.b16 %v327
        %v408 = vunpack.c.h.b16 %v327
        %v409 = vunpack.c.l.b16 %v328
        %v410 = vunpack.c.h.b16 %v328
        %v411 = vunpack.c.l.b16 %v329
        %v412 = vunpack.c.h.b16 %v329
        %v413 = vunpack.c.l.b16 %v330
        %v414 = vunpack.c.h.b16 %v330
        %v415 = vunpack.c.l.b16 %v331
        %v416 = vunpack.c.h.b16 %v331
        %v417 = vunpack.c.l.b16 %v332
        %v418 = vunpack.c.h.b16 %v332
        %v419 = vunpack.c.l.b16 %v333
        %v420 = vunpack.c.h.b16 %v333
        %v421 = vunpack.c.l.b16 %v334
        %v422 = vunpack.c.h.b16 %v334
        %v423 = vunpack.c.l.b16 %v335
        %v424 = vunpack.c.h.b16 %v335
        %v425 = vunpack.c.l.b16 %v336
        %v426 = vunpack.c.h.b16 %v336
        %v427 = vunpack.c.l.b16 %v337
        %v428 = vunpack.c.h.b16 %v337
        %v429 = vunpack.c.l.b16 %v338
        %v430 = vunpack.c.h.b16 %v338
        %v431 = vunpack.c.l.b16 %v339
        %v432 = vunpack.c.h.b16 %v339
        %v433 = vunpack.c.l.b16 %v340
        %v434 = vunpack.c.h.b16 %v340
        %v435 = vunpack.c.l.b16 %v341
        %v436 = vunpack.c.h.b16 %v341
        %v437 = vunpack.c.l.b16 %v342
        %v438 = vunpack.c.h.b16 %v342
        %v439 = vunpack.c.l.b16 %v343
        %v440 = vunpack.c.h.b16 %v343
        %v441 = vunpack.c.l.b16 %v344
        %v442 = vunpack.c.h.b16 %v344
        %v443 = vunpack.c.l.b16 %v345
        %v444 = vunpack.c.h.b16 %v345
        %v445 = vunpack.c.l.b16 %v346
        %v446 = vunpack.c.h.b16 %v346
        %v447 = vunpack.c.l.b16 %v347
        %v448 = vunpack.c.h.b16 %v347
        %v449 = vunpack.c.l.b16 %v348
        %v450 = vunpack.c.h.b16 %v348
        %v451 = vunpack.c.l.b16 %v349
        %v452 = vunpack.c.h.b16 %v349
        %v453 = vunpack.c.l.b16 %v350
        %v454 = vunpack.c.h.b16 %v350
        %v455 = vunpack.c.l.b16 %v351
        %v456 = vunpack.c.h.b16 %v351
        %v457 = vunpack.c.l.b16 %v352
        %v458 = vunpack.c.h.b16 %v352
        %v459 = vpack.c.b16 %v397, %v395
        %v460 = vpack.c.b16 %v398, %v396
        %v461 = vpack.c.b16 %v401, %v399
        %v462 = vpack.c.b16 %v402, %v400
        %v463 = vpack.c.b16 %v405, %v403
        %v464 = vpack.c.b16 %v406, %v404
        %v465 = vpack.c.b16 %v409, %v407
        %v466 = vpack.c.b16 %v410, %v408
        %v467 = vpack.c.b16 %v413, %v411
        %v468 = vpack.c.b16 %v414, %v412
        %v469 = vpack.c.b16 %v417, %v415
        %v470 = vpack.c.b16 %v418, %v416
        %v471 = vpack.c.b16 %v421, %v419
        %v472 = vpack.c.b16 %v422, %v420
        %v473 = vpack.c.b16 %v425, %v423
        %v474 = vpack.c.b16 %v426, %v424
        %v475 = vpack.c.b16 %v429, %v427
        %v476 = vpack.c.b16 %v430, %v428
        %v477 = vpack.c.b16 %v433, %v431
        %v478 = vpack.c.b16 %v434, %v432
        %v479 = vpack.c.b16 %v437, %v435
        %v480 = vpack.c.b16 %v438, %v436
        %v481 = vpack.c.b16 %v441, %v439
        %v482 = vpack.c.b16 %v442, %v440
        %v483 = vpack.c.b16 %v445, %v443
        %v484 = vpack.c.b16 %v446, %v444
        %v485 = vpack.c.b16 %v449, %v447
        %v486 = vpack.c.b16 %v450, %v448
        %v487 = vpack.c.b16 %v453, %v451
        %v488 = vpack.c.b16 %v454, %v452
        %v489 = vpack.c.b16 %v457, %v455
        %v490 = vpack.c.b16 %v458, %v456
        %523 = vmatprep.subr.bf16.mxu0 %v474
        %524 = vmatpush1.bf16.xpose.msra.mxu0 %v473
        %525 = vmatprep.subr.bf16.mxu0 %v472
        %526 = vmatpush1.bf16.xpose.msra.mxu0 %v471
        %527 = vmatprep.subr.bf16.mxu0 %v470
        %528 = vmatpush1.bf16.xpose.msra.mxu0 %v469
        %529 = vmatprep.subr.bf16.mxu0 %v468
        %530 = vmatpush1.bf16.xpose.msra.mxu0 %v467
        %531 = vmatprep.subr.bf16.mxu0 %v466
        %532 = vmatpush1.bf16.xpose.msra.mxu0 %v465
        %533 = vmatprep.subr.bf16.mxu0 %v464
        %534 = vmatpush1.bf16.xpose.msra.mxu0 %v463
        %535 = vmatprep.subr.bf16.mxu0 %v462
        %536 = vmatpush1.bf16.xpose.msra.mxu0 %v461
        %537 = vmatprep.subr.bf16.mxu0 %v460
        %538 = vmatpush1.bf16.xpose.msra.mxu0 %v459
        %539 = vmatprep.subr.bf16.mxu0 %v490
        %540 = vmatpush2.bf16.xpose.msra.mxu0 %v489
        %541 = vmatprep.subr.bf16.mxu0 %v488
        %542 = vmatpush2.bf16.xpose.msra.mxu0 %v487
        %543 = vmatprep.subr.bf16.mxu0 %v486
        %544 = vmatpush2.bf16.xpose.msra.mxu0 %v485
        %545 = vmatprep.subr.bf16.mxu0 %v484
        %546 = vmatpush2.bf16.xpose.msra.mxu0 %v483
        %547 = vmatprep.subr.bf16.mxu0 %v482
        %548 = vmatpush2.bf16.xpose.msra.mxu0 %v481
        %549 = vmatprep.subr.bf16.mxu0 %v480
        %550 = vmatpush2.bf16.xpose.msra.mxu0 %v479
        %551 = vmatprep.subr.bf16.mxu0 %v478
        %552 = vmatpush2.bf16.xpose.msra.mxu0 %v477
        %553 = vmatprep.subr.bf16.mxu0 %v476
        %554 = vmatpush2.bf16.xpose.msra.mxu0 %v475
        %555 = vmatprep.mubr.bf16.mxu0 %v360
        %556 = vmatmul.mubr.bf16.gmra.mxu0 %v359
        %v557 = vpop.f32.mrf.mxu0
        %v558 = vadd.f32 0.0, %v557
        %v559 = vpop.f32.mrf.mxu0
        %v560 = vadd.f32 0.0, %v559
        %v561 = vpop.f32.mrf.mxu0
        %v562 = vadd.f32 0.0, %v561
        %v563 = vpop.f32.mrf.mxu0
        %v564 = vadd.f32 0.0, %v563
        %565 = vdwg.mxu0
        %v566 = vlaneseq
        %v567 = vand.u32 %v566, 127
        %v568 = vadd.s32 %v567, 128
        %s569 = smul.u32 %s25, 256
        %v570 = vstv %s569
        %v571 = vadd.s32 %v567, %v570
        %v572 = vadd.s32 %v568, %v570
        %vm573 = vcmp.lt.s32.totalorder %v571, 500
        %vm574 = vcmp.lt.s32.totalorder %v572, 500
        %v575 = vsel %vm573, %v558, -inf
        %v576 = vsel %vm574, %v560, -inf
        %v577 = vsel %vm573, %v562, -inf
        %v578 = vsel %vm574, %v564, -inf
        %v579 = vld [vmem:[#allocation3] sm:$0xff]
        %v580 = vld [vmem:[#allocation3 + $0x8] sm:$0xff]
        %v581 = vmax.f32 %v575, %v576
        %582 = vmax.xlane.f32.xlu0 %v581
        %v583 = vpop.xlane.xlu0 %582
        %v584 = vmax.f32 %v577, %v578
        %585 = vmax.xlane.f32.xlu0 %v584
        %v586 = vpop.xlane.xlu0 %585
        %v587 = vmax.f32 %v579, %v583
        %v588 = vmax.f32 %v580, %v586
        %v589 = vsub.f32 %v579, %v587
        %v590 = vsub.f32 %v580, %v588
        %v591 = vmul.f32 %v589, 1.442695
        %v592 = vpow.pop %v591
        %v593 = vmul.f32 %v590, 1.442695
        %v594 = vpow.pop %v593
        %v595 = vld [vmem:[#allocation4] sm:$0xff]
        %v596 = vld [vmem:[#allocation4 + $0x8] sm:$0xff]
        %v597 = vmul.f32 %v592, %v595
        %v598 = vmul.f32 %v594, %v596
        %600 = vset.pattern.permute.xlu0 0
        %601 = vperm.xlu0 %600, %v587
        %v602 = vpop.permute.xlu0 %601
        %605 = vset.pattern.permute.xlu0 0
        %606 = vperm.xlu0 %605, %v588
        %v607 = vpop.permute.xlu0 %606
        %v609 = vsub.f32 %v575, %v602
        %v610 = vsub.f32 %v576, %v602
        %v611 = vsub.f32 %v577, %v607
        %v612 = vsub.f32 %v578, %v607
        %v613 = vmul.f32 %v609, 1.442695
        %v614 = vpow.pop %v613
        %v615 = vmul.f32 %v610, 1.442695
        %v616 = vpow.pop %v615
        %v617 = vmul.f32 %v611, 1.442695
        %v618 = vpow.pop %v617
        %v619 = vmul.f32 %v612, 1.442695
        %v620 = vpow.pop %v619
        %v621 = vadd.f32 %v614, %v616
        %622 = vadd.xlane.f32.xlu0 %v621
        %v623 = vpop.xlane.xlu0 %622
        %v624 = vadd.f32 %v618, %v620
        %625 = vadd.xlane.f32.xlu0 %v624
        %v626 = vpop.xlane.xlu0 %625
        %v627 = vadd.f32 %v597, %v623
        %v628 = vadd.f32 %v598, %v626
        %vm629 = vcmask 7168
        %630 = vst.msk [vmem:[#allocation4] sm:$0xff] %vm629, %v627
        %631 = vst.msk [vmem:[#allocation4 + $0x8] sm:$0xff] %vm629, %v628
        %632 = vst.msk [vmem:[#allocation3] sm:$0xff] %vm629, %v587
        %633 = vst.msk [vmem:[#allocation3 + $0x8] sm:$0xff] %vm629, %v588
        %v634 = vld [vmem:[#allocation5] sm:$0xff]
        %v635 = vld [vmem:[#allocation5 + $0x8] sm:$0xff]
        %v636 = vld [vmem:[%s262] sm:$0xff]
        %v637 = vld [vmem:[%s262 + $0x8] sm:$0xff]
        %638 = vset.pattern.permute.xlu0 0
        %639 = vperm.xlu0 %638, %v636
        %v640 = vpop.permute.xlu0 %639
        %641 = vset.pattern.permute.xlu0 0
        %642 = vperm.xlu0 %641, %v637
        %v643 = vpop.permute.xlu0 %642
        %vm644 = vcmp.eq.s32.totalorder %v571, %v640
        %vm645 = vcmp.eq.s32.totalorder %v572, %v640
        %vm646 = vcmp.eq.s32.totalorder %v571, %v643
        %vm647 = vcmp.eq.s32.totalorder %v572, %v643
        %v648 = vsel %vm644, %v558, 0.0
        %v649 = vsel %vm645, %v560, 0.0
        %v650 = vsel %vm646, %v562, 0.0
        %v651 = vsel %vm647, %v564, 0.0
        %v652 = vadd.f32 %v648, %v649
        %653 = vadd.xlane.f32.xlu0 %v652
        %v654 = vpop.xlane.xlu0 %653
        %v655 = vadd.f32 %v650, %v651
        %656 = vadd.xlane.f32.xlu0 %v655
        %v657 = vpop.xlane.xlu0 %656
        %v658 = vadd.f32 %v634, %v654
        %v659 = vadd.f32 %v635, %v657
        %660 = vst.msk [vmem:[#allocation5] sm:$0xff] %vm629, %v658
        %661 = vst.msk [vmem:[#allocation5 + $0x8] sm:$0xff] %vm629, %v659
        %p662 = scmp.eq.s32.totalorder %s25, 1
        // Predicated region
        $region45: #{tpu_custom_call.1} parent=31 // pred_check
          %p663 = pneg %p662
        $region46: #{tpu_custom_call.1} parent=31 // pred_check_branch
          %665 = sbr.rel (%p663) target = $region48
        $region47: #{tpu_custom_call.1} parent=31 // pred_region
          %v666 = vld [vmem:[#allocation3] sm:$0xff]
          %v667 = vld [vmem:[#allocation3 + $0x8] sm:$0xff]
          %v668 = vld [vmem:[#allocation4] sm:$0xff]
          %v669 = vld [vmem:[#allocation4 + $0x8] sm:$0xff]
          %v670 = vlog2.pop %v668
          %v671 = vmul.f32 %v670, 0.6931472
          %v672 = vlog2.pop %v669
          %v673 = vmul.f32 %v672, 0.6931472
          %v674 = vadd.f32 %v666, %v671
          %v675 = vadd.f32 %v667, %v673
          %v676 = vld [vmem:[#allocation5] sm:$0xff]
          %v677 = vld [vmem:[#allocation5 + $0x8] sm:$0xff]
          %v678 = vsub.f32 %v674, %v676
          %v679 = vsub.f32 %v675, %v677
          %680 = vst.msk [vmem:[%s268] sm:$0xff] %vm629, %v678
          %681 = vst.msk [vmem:[%s268 + $0x8] sm:$0xff] %vm629, %v679
        $region48: #{tpu_custom_call.1} parent=31 // pred_fallthru
          _
        %s682 = smul.u32 2, %s24
        %p683 = scmp.lt.s32.totalorder %s682, 3
        %s684 = scalar_select %p683, %s682, 3
        %s685 = smul.addr %s684, 8
        %s686 = scalar_lea.vmem %s3, %s685
        // Predicated region
        $region49: #{tpu_custom_call.1} parent=31 // pred_check
          %p687 = pneg %p128
        $region50: #{tpu_custom_call.1} parent=31 // pred_check_branch
          %689 = sbr.rel (%p687) target = $region52
        $region51: #{tpu_custom_call.1} parent=31 // pred_region
          %s690 = smul.u32 2, %s24
        $region52: #{tpu_custom_call.1} parent=31 // pred_fallthru
          _
      $region32: #{tpu_custom_call.1} parent=5 // pred_fallthru
        _
      %p691 = scmp.le.s32.totalorder 2, %s15
      // Predicated region
      $region53: #{tpu_custom_call.1} parent=5 // pred_check
        %p692 = pneg %p691
      $region54: #{tpu_custom_call.1} parent=5 // pred_check_branch
        %694 = sbr.rel (%p692) target = $region56
      $region55: #{tpu_custom_call.1} parent=5 // pred_region
        %s695 = ssub.s32 %s15, 2
        // Predicated region
        $region57: #{tpu_custom_call.1} parent=55 // pred_check
          %p696 = pneg %p134
        $region58: #{tpu_custom_call.1} parent=55 // pred_check_branch
          %698 = sbr.rel (%p696) target = $region60
        $region59: #{tpu_custom_call.1} parent=55 // pred_region
          %s699 = smul.u32 2, %s26
          %p700 = scmp.lt.s32.totalorder %s699, 3
          %s701 = scalar_select %p700, %s699, 3
          %s702 = smul.addr %s701, 8
          %s703 = scalar_lea.vmem %s3, %s702
        $region60: #{tpu_custom_call.1} parent=55 // pred_fallthru
          _
      $region56: #{tpu_custom_call.1} parent=5 // pred_fallthru
        _
    $region6: #{tpu_custom_call.1} parent=1 // loop_footer
      %s19 = sadd.s32 1, %s15
    $region7: #{tpu_custom_call.1} parent=1 // loop_footer_branch
      %14 = sbr.rel target = $region3
    $region8: #{tpu_custom_call.1} parent=1 // loop_exit
      _
    %704 = vsyncpa [#allocation7], 1
    %s705 = scalar_lea.sflag [#allocation7], 1
    %706 = vsyncpa %s705, 1
    %707 = vsyncpa [#allocation9], 1
    %s708 = scalar_lea.sflag [#allocation9], 1
    %709 = vsyncpa %s708, 1

</llo_original>
